<compile_context>
chip_gen: v7x
topology: tpu7x:2x2x1
jax: 0.10.0
libtpu: 0.0.40
codegen_flags: <defaults>
</compile_context>

<pallas_src>
import functools

import jax
import jax.numpy as jnp
from jax.experimental import pallas as pl
from jax.experimental.pallas import tpu as pltpu


def _round_up(x, m):
    return (x + m - 1) // m * m


def _tile_bytes(rows, cols, itemsize):
    """Physical VMEM bytes of a (rows, cols) block after Mosaic (sublane, lane) padding."""
    sublane = {4: 8, 2: 16, 1: 32}.get(itemsize, 8)
    return (_round_up(max(int(rows), 1), sublane)
            * _round_up(max(int(cols), 1), 128) * itemsize)


def _vmem_budget_bytes():
    """Generation-aware VMEM budget: v5e/v6e have 128 MiB VMEM, v7x 64 MiB per TC."""
    try:
        info = pltpu.get_tpu_info()
        cap = int(getattr(info, "vmem_capacity_bytes", 64 << 20))
    except Exception:
        cap = 64 << 20  # conservative (v7x-safe) default
    budget = (56 << 20) if cap >= (96 << 20) else (28 << 20)
    return budget, cap


def _reward_head_kernel(x_ref, w1_ref, b1_ref, w2r_ref, b2_ref, ot_ref, *, mm_dtype):
    """output_size == 1 path: MXU for layer 1, VPU/XLU for layer 2, lane-dense store.

    The in-kernel astype replaces the old wrapper-level x.astype (an extra HBM pass);
    on the f32 path it is a no-op.
    """
    x = x_ref[...].astype(mm_dtype)
    w1 = w1_ref[...].astype(mm_dtype)
    h = jnp.dot(x, w1, preferred_element_type=jnp.float32)
    h = jnp.tanh(h + b1_ref[...])                          # (TB, H) f32 on VPU/EUP
    # Layer 2 (N == 1): elementwise multiply + lane reduction instead of an MXU pass
    # that would use a single result lane; stored transposed (1, TB) => lane-dense vst.
    y = jnp.sum(h * w2r_ref[...], axis=-1)                 # (TB,)
    y = y.reshape(1, -1) + b2_ref[...]                     # (1, TB): batch on lanes
    ot_ref[...] = jax.nn.sigmoid(y).astype(ot_ref.dtype)


def _reward_mlp_kernel(x_ref, w1_ref, b1_ref, w2_ref, b2_ref, o_ref, *, mm_dtype):
    """General output_size > 1 fallback: two MXU matmuls."""
    x = x_ref[...].astype(mm_dtype)
    w1 = w1_ref[...].astype(mm_dtype)
    h = jnp.tanh(jnp.dot(x, w1, preferred_element_type=jnp.float32) + b1_ref[...])
    y = jnp.dot(h, w2_ref[...], preferred_element_type=jnp.float32) + b2_ref[...]
    # NOTE: for 1 < out_size < 128 these stores are masked (vst.msk); callers that
    # care can pad output_size to a multiple of 128 or consume a transposed layout.
    o_ref[...] = jax.nn.sigmoid(y).astype(o_ref.dtype)


def _xla_forward(x, w1, b1, w2, b2, mm_dtype):
    """Plain fused-XLA path for small batches (Pallas launch/step overhead dominates)."""
    h = jnp.tanh(jnp.dot(x.astype(mm_dtype), w1.astype(mm_dtype),
                         preferred_element_type=jnp.float32) + b1)
    y = jnp.dot(h, w2, preferred_element_type=jnp.float32) + b2
    return jax.nn.sigmoid(y)


def reward_model_forward(x, w1, b1, w2, b2, *, block_rows=None,
                         matmul_dtype=jnp.float32, min_pallas_rows=512):
    """Forward pass of RewardModelNetwork.

    x:  [B, input_size] f32
    w1: [input_size, hidden]   (pre-transposed vs. PyTorch's [out, in])
    b1: [1, hidden]
    w2: [hidden, output_size]
    b2: [1, output_size]
    Returns [B, output_size] f32.
    """
    B, in_size = x.shape
    hid = w1.shape[1]
    out_size = w2.shape[1]
    lane_dense = out_size == 1

    x = x.astype(jnp.float32)
    w1 = w1.astype(jnp.float32)
    b1 = b1.astype(jnp.float32).reshape(1, hid)
    w2 = w2.astype(jnp.float32)
    b2 = b2.astype(jnp.float32).reshape(1, out_size)

    # Tiny batches: a 1-2 step grid is dominated by pallas_call launch + per-step
    # overhead; the fused XLA MLP is at least as fast there.
    if B < min_pallas_rows and block_rows is None:
        return _xla_forward(x, w1, b1, w2, b2, matmul_dtype)

    mm_bytes = jnp.dtype(matmul_dtype).itemsize
    budget, vmem_cap = _vmem_budget_bytes()

    def vmem_need(tb):
        x_bytes = 2 * _tile_bytes(tb, in_size, 4)             # double-buffered f32 x tiles
        if mm_bytes != 4:
            x_bytes += _tile_bytes(tb, in_size, mm_bytes)      # in-kernel low-precision copy
        h_bytes = _tile_bytes(tb, hid, 4)                      # layer-1 activations
        if lane_dense:
            o_bytes = 2 * _tile_bytes(1, tb, 4)
            w_bytes = 2 * (_tile_bytes(in_size, hid, 4) + 2 * _tile_bytes(1, hid, 4)
                           + _tile_bytes(1, 1, 4))
        else:
            o_bytes = 2 * _tile_bytes(tb, out_size, 4)
            w_bytes = 2 * (_tile_bytes(in_size, hid, 4) + _tile_bytes(1, hid, 4)
                           + _tile_bytes(hid, out_size, 4) + _tile_bytes(1, out_size, 4))
        return x_bytes + h_bytes + o_bytes + w_bytes

    # --- batch tile size: biggest tile fitting the generation-aware VMEM budget ---
    if block_rows is None:
        tb = 2048
        while tb > 128 and vmem_need(tb) > budget:
            tb //= 2
        # Keep >= ~4 grid steps (when B allows) so v7x's two TensorCores both get work
        # and the batch pipeline has something to overlap; harmless on v5e/v6e.
        if B > 128:
            tb = min(tb, max(128, _round_up(pl.cdiv(B, 4), 128)))
    else:
        tb = int(block_rows)

    if B <= tb:
        tb = B                                    # single tile: block == full array
    else:
        mult = 128 if lane_dense else 8           # lane / sublane divisibility
        assert tb % mult == 0, f"block_rows must be a multiple of {mult}"

    # No wrapper jnp.pad: Pallas masks the ragged tail block (OOB stores dropped).
    num_tiles = pl.cdiv(B, tb)

    need = vmem_need(tb)
    vmem_limit = int(min(max(need + (8 << 20), 32 << 20), int(vmem_cap * 0.9)))

    cparams = pltpu.CompilerParams(
        dimension_semantics=("parallel",),
        vmem_limit_bytes=vmem_limit,
    )
    cost = pl.CostEstimate(
        flops=2 * B * in_size * hid + 2 * B * hid * out_size,
        transcendentals=B * (hid + out_size),     # tanh + sigmoid
        bytes_accessed=(B * in_size * 4
                        + (in_size * hid + hid + hid * out_size + out_size) * 4
                        + B * out_size * 4),
    )

    def resident(shape):
        # Constant index_map: fetched once, stays resident in VMEM across grid steps.
        return pl.BlockSpec(shape, lambda i: (0,) * len(shape))

    x_spec = pl.BlockSpec((tb, in_size), lambda i: (i, 0))

    if lane_dense:
        w2_row = w2.T                             # (1, hid): weights-only transpose, negligible
        out_t = pl.pallas_call(
            functools.partial(_reward_head_kernel, mm_dtype=matmul_dtype),
            out_shape=jax.ShapeDtypeStruct((1, B), jnp.float32),
            grid=(num_tiles,),
            in_specs=[
                x_spec,
                resident((in_size, hid)),
                resident((1, hid)),
                resident((1, hid)),
                resident((1, 1)),
            ],
            out_specs=pl.BlockSpec((1, tb), lambda i: (0, i)),
            compiler_params=cparams,
            cost_estimate=cost,
        )(x, w1, b1, w2_row, b2)
        return out_t.reshape(B, 1)                # (1, B) -> (B, 1): contiguous, free

    out = pl.pallas_call(
        functools.partial(_reward_mlp_kernel, mm_dtype=matmul_dtype),
        out_shape=jax.ShapeDtypeStruct((B, out_size), jnp.float32),
        grid=(num_tiles,),
        in_specs=[
            x_spec,
            resident((in_size, hid)),
            resident((1, hid)),
            resident((hid, out_size)),
            resident((1, out_size)),
        ],
        out_specs=pl.BlockSpec((tb, out_size), lambda i: (i, 0)),
        compiler_params=cparams,
        cost_estimate=cost,
    )(x, w1, b1, w2, b2)
    return out


def init_params(key, input_size, hidden_size, output_size):
    """Deterministic init mimicking nn.Linear's U(-1/sqrt(fan_in), 1/sqrt(fan_in))."""
    k1, k2, k3, k4 = jax.random.split(key, 4)
    bound1 = 1.0 / (input_size ** 0.5)
    bound2 = 1.0 / (hidden_size ** 0.5)
    # Stored already transposed to [in, out] for the kernel.
    w1 = jax.random.uniform(k1, (input_size, hidden_size), jnp.float32, -bound1, bound1)
    b1 = jax.random.uniform(k2, (1, hidden_size), jnp.float32, -bound1, bound1)
    w2 = jax.random.uniform(k3, (hidden_size, output_size), jnp.float32, -bound2, bound2)
    b2 = jax.random.uniform(k4, (1, output_size), jnp.float32, -bound2, bound2)
    return w1, b1, w2, b2


if __name__ == "__main__":
    # Small shapes consistent with the module (obs+act features -> scalar reward).
    batch, input_size, hidden_size, output_size = 8, 16, 32, 1

    key = jax.random.PRNGKey(0)
    kx, kp, kb, kg = jax.random.split(key, 4)
    x = jax.random.normal(kx, (batch, input_size), jnp.float32)
    w1, b1, w2, b2 = init_params(kp, input_size, hidden_size, output_size)

    # Reference in plain JAX (same math as the PyTorch module).
    ref = jax.nn.sigmoid(jnp.tanh(x @ w1 + b1) @ w2 + b2)

    # 1) f32 Pallas head path (forced past the small-batch XLA dispatch).
    out = jax.block_until_ready(
        reward_model_forward(x, w1, b1, w2, b2, min_pallas_rows=0))
    assert out.shape == (batch, output_size)
    assert jnp.allclose(out, ref, atol=1e-5, rtol=1e-5)

    # 2) bf16-MXU path (operand cast happens inside the kernel, not the wrapper).
    out_bf16 = jax.block_until_ready(
        reward_model_forward(x, w1, b1, w2, b2, matmul_dtype=jnp.bfloat16,
                             min_pallas_rows=0))
    assert out_bf16.shape == (batch, output_size)
    assert jnp.allclose(out_bf16, ref, atol=2e-2, rtol=2e-2)

    # 3) multi-tile grid with an unpadded ragged tail: B=300, tb=128 -> 3 tiles,
    #    last block masked by Pallas (no wrapper-level jnp.pad anymore).
    batch_big = 300
    xb = jax.random.normal(kb, (batch_big, input_size), jnp.float32)
    ref_b = jax.nn.sigmoid(jnp.tanh(xb @ w1 + b1) @ w2 + b2)
    out_b = jax.block_until_ready(
        reward_model_forward(xb, w1, b1, w2, b2, block_rows=128, min_pallas_rows=0))
    assert out_b.shape == (batch_big, output_size)
    assert jnp.allclose(out_b, ref_b, atol=1e-5, rtol=1e-5)

    # 4) small-batch default dispatch goes through the plain XLA path.
    out_xla = jax.block_until_ready(reward_model_forward(x, w1, b1, w2, b2))
    assert jnp.allclose(out_xla, ref, atol=1e-5, rtol=1e-5)

    # 5) output_size > 1 fallback kernel (two-MXU-matmul path).
    out_multi = 4
    w1m, b1m, w2m, b2m = init_params(kg, input_size, hidden_size, out_multi)
    ref_m = jax.nn.sigmoid(jnp.tanh(x @ w1m + b1m) @ w2m + b2m)
    out_m = jax.block_until_ready(
        reward_model_forward(x, w1m, b1m, w2m, b2m, min_pallas_rows=0))
    assert out_m.shape == (batch, out_multi)
    assert jnp.allclose(out_m, ref_m, atol=1e-5, rtol=1e-5)

    print("KERNEL_OK")
</pallas_src>

<mosaic_0001>
module attributes {stable_mosaic.version = 11 : i64} {
  func.func @_reward_head_kernel(%arg0: i32, %arg1: memref<8x16xf32, #tpu.memory_space<vmem>>, %arg2: memref<16x32xf32, #tpu.memory_space<vmem>>, %arg3: memref<1x32xf32, #tpu.memory_space<vmem>>, %arg4: memref<1x32xf32, #tpu.memory_space<vmem>>, %arg5: memref<1x1xf32, #tpu.memory_space<vmem>>, %arg6: memref<1x8xf32, #tpu.memory_space<vmem>>) attributes {dimension_semantics = [#tpu.dimension_semantics<parallel>], iteration_bounds = array<i64: 1>, scalar_prefetch = 0 : i64, scratch_operands = 0 : i64, tpu.core_type = #tpu.core_type<tc>, window_params = [{transform_indices = @transform_0, window_bounds = array<i64: 8, 16>}, {pipeline_mode = #tpu.pipeline_mode<synchronous>, transform_indices = @transform_1, window_bounds = array<i64: 16, 32>}, {pipeline_mode = #tpu.pipeline_mode<synchronous>, transform_indices = @transform_2, window_bounds = array<i64: 1, 32>}, {pipeline_mode = #tpu.pipeline_mode<synchronous>, transform_indices = @transform_3, window_bounds = array<i64: 1, 32>}, {pipeline_mode = #tpu.pipeline_mode<synchronous>, transform_indices = @transform_4, window_bounds = array<i64: 1, 1>}, {transform_indices = @transform_5, window_bounds = array<i64: 1, 8>}]} {
    %c0 = arith.constant 0 : index
    %c0_0 = arith.constant 0 : index
    %0 = vector.load %arg1[%c0, %c0_0] : memref<8x16xf32, #tpu.memory_space<vmem>>, vector<8x16xf32>
    %c0_1 = arith.constant 0 : index
    %c0_2 = arith.constant 0 : index
    %1 = vector.load %arg2[%c0_1, %c0_2] : memref<16x32xf32, #tpu.memory_space<vmem>>, vector<16x32xf32>
    %cst = arith.constant dense<0.000000e+00> : vector<8x32xf32>
    %2 = tpu.matmul %0, %1, %cst {dimension_numbers = #tpu.dot_dimension_numbers<[1], [0], [0], [1], [0, 0, 1, 1], [], []>} : vector<8x16xf32>, vector<16x32xf32>, vector<8x32xf32> -> vector<8x32xf32>
    %c0_3 = arith.constant 0 : index
    %c0_4 = arith.constant 0 : index
    %3 = vector.load %arg3[%c0_3, %c0_4] : memref<1x32xf32, #tpu.memory_space<vmem>>, vector<1x32xf32>
    %4 = vector.broadcast %3 : vector<1x32xf32> to vector<8x32xf32>
    %5 = arith.addf %2, %4 : vector<8x32xf32>
    %6 = math.tanh %5 : vector<8x32xf32>
    %c0_5 = arith.constant 0 : index
    %c0_6 = arith.constant 0 : index
    %7 = vector.load %arg4[%c0_5, %c0_6] : memref<1x32xf32, #tpu.memory_space<vmem>>, vector<1x32xf32>
    %8 = vector.broadcast %7 : vector<1x32xf32> to vector<8x32xf32>
    %9 = arith.mulf %6, %8 : vector<8x32xf32>
    %cst_7 = arith.constant dense<0.000000e+00> : vector<8xf32>
    %10 = vector.multi_reduction <add>, %9, %cst_7 [1] : vector<8x32xf32> to vector<8xf32>
    %11 = vector.shape_cast %10 : vector<8xf32> to vector<1x8xf32>
    %c0_8 = arith.constant 0 : index
    %c0_9 = arith.constant 0 : index
    %12 = vector.load %arg5[%c0_8, %c0_9] : memref<1x1xf32, #tpu.memory_space<vmem>>, vector<1x1xf32>
    %13 = vector.broadcast %12 : vector<1x1xf32> to vector<1x8xf32>
    %14 = arith.addf %11, %13 : vector<1x8xf32>
    %15 = arith.negf %14 : vector<1x8xf32>
    %16 = math.exp %15 : vector<1x8xf32>
    %cst_10 = arith.constant 1.000000e+00 : f32
    %17 = vector.broadcast %cst_10 : f32 to vector<1x8xf32>
    %18 = arith.addf %17, %16 : vector<1x8xf32>
    %19 = arith.divf %17, %18 : vector<1x8xf32>
    %c0_11 = arith.constant 0 : index
    %c0_12 = arith.constant 0 : index
    %20 = vector.load %arg6[%c0_11, %c0_12] : memref<1x8xf32, #tpu.memory_space<vmem>>, vector<1x8xf32>
    tpu.vector_store %arg6[%c0_11, %c0_12], %19 {strides = array<i32>} : memref<1x8xf32, #tpu.memory_space<vmem>>, vector<1x8xf32>,
    return
  }
  func.func @transform_0(%arg0: i32) -> (i32, i32) {
    %c0_i32 = arith.constant 0 : i32
    %c0_i32_0 = arith.constant 0 : i32
    return %arg0, %c0_i32 : i32, i32
  }
  func.func @transform_1(%arg0: i32) -> (i32, i32) {
    %c0_i32 = arith.constant 0 : i32
    %c0_i32_0 = arith.constant 0 : i32
    %c0_i32_1 = arith.constant 0 : i32
    return %c0_i32, %c0_i32_0 : i32, i32
  }
  func.func @transform_2(%arg0: i32) -> (i32, i32) {
    %c0_i32 = arith.constant 0 : i32
    %c0_i32_0 = arith.constant 0 : i32
    %c0_i32_1 = arith.constant 0 : i32
    return %c0_i32, %c0_i32_0 : i32, i32
  }
  func.func @transform_3(%arg0: i32) -> (i32, i32) {
    %c0_i32 = arith.constant 0 : i32
    %c0_i32_0 = arith.constant 0 : i32
    %c0_i32_1 = arith.constant 0 : i32
    return %c0_i32, %c0_i32_0 : i32, i32
  }
  func.func @transform_4(%arg0: i32) -> (i32, i32) {
    %c0_i32 = arith.constant 0 : i32
    %c0_i32_0 = arith.constant 0 : i32
    %c0_i32_1 = arith.constant 0 : i32
    return %c0_i32, %c0_i32_0 : i32, i32
  }
  func.func @transform_5(%arg0: i32) -> (i32, i32) {
    %c0_i32 = arith.constant 0 : i32
    %c0_i32_0 = arith.constant 0 : i32
    return %c0_i32, %arg0 : i32, i32
  }
}

</mosaic_0001>

<llo_original>
// kernel: tpu_custom_call.1
$region0: #{tpu_custom_call.1}
  #allocation0 [shape = 'u32[]', space=smem, size = 0x4, offset = 0x4, fixed_abs, tag = 'smem constant byte address 0x4 - core index']
  #allocation1 [shape = 'u32[144,128]{1,0:T(1,128)}', space=vmem, size = 0x12000, scoped, tag = 'internal scratch']
  #allocation2 [shape = 'f32[1,1]{1,0:T(1,128)S(1)}', space=vmem, size = 0x200, scoped, tag = 'scoped memory for tpu_custom_call.1']
  %s0 = inlined_call_operand.hbm [shape: f32[8,16], index: 0, kind: input, shape index: {}]
  %s1 = inlined_call_operand.hbm [shape: f32[16,32], index: 1, kind: input, shape index: {}]
  %s2 = inlined_call_operand.vmem [shape: f32[1,32], index: 2, kind: input, shape index: {}]
  %s3 = inlined_call_operand.vmem [shape: f32[1,32], index: 3, kind: input, shape index: {}]
  %s4 = inlined_call_operand.<no memory space> [shape: f32[1,1], index: 4, kind: input, shape index: {}]
  %s5 = inlined_call_operand.hbm [shape: f32[1,8], index: 5, kind: output, shape index: {}]
  %s6 = sld [smem:[#allocation0]]
  $region38: #{tpu_custom_call.1} parent=0
    _
  %s8 = ssub.s32 1, %s6
  %s9 = scalar_select 0, %s8, %s6
  %v10 = vstv %s4
  %11 = vst [vmem:[#allocation2] sm:$0x1] %v10
  $region1: #{tpu_custom_call.1} parent=0
    #allocation3 [shape = 'u8[4096]{0}', space=vmem, size = 0x1000, scoped, tag = 'input window, operand 0, single buffered']
    #allocation4 [shape = 's32[1]{0}', space=sflag, size = 0x4, scoped, tag = 'scoped memory for tpu_custom_call.1']
    #allocation5 [shape = 's32[1]{0}', space=sflag, size = 0x4, scoped, tag = 'scoped memory for tpu_custom_call.1']
    #allocation6 [shape = 'u8[8192]{0}', space=vmem, size = 0x2000, scoped, tag = 'input window, operand 1, single buffered']
    #allocation7 [shape = 's32[1]{0}', space=sflag, size = 0x4, scoped, tag = 'scoped memory for tpu_custom_call.1']
    #allocation8 [shape = 'u8[512]{0}', space=vmem, size = 0x400, scoped, tag = 'output window, operand 0, single buffered']
    %12 = vsyncpa [#allocation4], 0
    %13 = vsyncpa [#allocation7], 0
    %14 = vsyncpa [#allocation5], 0
    // Predicated region
    $region2: #{tpu_custom_call.1} parent=1 // pred_check
      _
    $region3: #{tpu_custom_call.1} parent=1 // pred_check_branch
      %16 = sbr.rel (0) target = $region5
    $region4: #{tpu_custom_call.1} parent=1 // pred_region
      %s18 = ssub.s32 128, 128
      %19 = vsyncadd [#allocation4], %s18
      %s21 = sshll.u32 [#allocation3], 4
      %s22 = int_to_ptr.vmem [resolvable:$true] %s21
      %24 = dma.hbm_to_vmem [thread:$0]  %s0, 128, %s22, [#allocation4]
    $region5: #{tpu_custom_call.1} parent=1 // pred_fallthru
      _
    // Predicated region
    $region6: #{tpu_custom_call.1} parent=1 // pred_check
      _
    $region7: #{tpu_custom_call.1} parent=1 // pred_check_branch
      %26 = sbr.rel (0) target = $region9
    $region8: #{tpu_custom_call.1} parent=1 // pred_region
      %s28 = ssub.s32 256, 256
      %29 = vsyncadd [#allocation7], %s28
      %s30 = sshll.u32 [#allocation6], 4
      %s31 = int_to_ptr.vmem [resolvable:$true] %s30
      %36 = dma.hbm_to_vmem [thread:$0]  %s1, 256, %s31, [#allocation7], 128, 128, 8
    $region9: #{tpu_custom_call.1} parent=1 // pred_fallthru
      _
    // Predicated region
    $region10: #{tpu_custom_call.1} parent=1 // pred_check
      _
    $region11: #{tpu_custom_call.1} parent=1 // pred_check_branch
      %38 = sbr.rel (0) target = $region13
    $region12: #{tpu_custom_call.1} parent=1 // pred_region
      _
    $region13: #{tpu_custom_call.1} parent=1 // pred_fallthru
      _
    // Predicated region
    $region14: #{tpu_custom_call.1} parent=1 // pred_check
      _
    $region15: #{tpu_custom_call.1} parent=1 // pred_check_branch
      %40 = sbr.rel (0) target = $region17
    $region16: #{tpu_custom_call.1} parent=1 // pred_region
      _
    $region17: #{tpu_custom_call.1} parent=1 // pred_fallthru
      _
    // Predicated region
    $region18: #{tpu_custom_call.1} parent=1 // pred_check
      _
    $region19: #{tpu_custom_call.1} parent=1 // pred_check_branch
      %42 = sbr.rel (0) target = $region21
    $region20: #{tpu_custom_call.1} parent=1 // pred_region
      _
    $region21: #{tpu_custom_call.1} parent=1 // pred_fallthru
      _
    // Predicated region
    $region22: #{tpu_custom_call.1} parent=1 // pred_check
      _
    $region23: #{tpu_custom_call.1} parent=1 // pred_check_branch
      %44 = sbr.rel (0) target = $region25
    $region24: #{tpu_custom_call.1} parent=1 // pred_region
      %45 = dma.done [#allocation4], 128
    $region25: #{tpu_custom_call.1} parent=1 // pred_fallthru
      _
    // Predicated region
    $region26: #{tpu_custom_call.1} parent=1 // pred_check
      _
    $region27: #{tpu_custom_call.1} parent=1 // pred_check_branch
      %47 = sbr.rel (0) target = $region29
    $region28: #{tpu_custom_call.1} parent=1 // pred_region
      %48 = dma.done [#allocation7], 256
    $region29: #{tpu_custom_call.1} parent=1 // pred_fallthru
      _
    %v49 = vld [vmem:[#allocation3] sm:$0xff]
    %v50 = vld [vmem:[#allocation6] sm:$0xff]
    %v51 = vld [vmem:[#allocation6 + $0x8] sm:$0xff]
    %v52 = vld [vmem:[%s2] sm:$0x1]
    %v54 = vlaneseq
    %v55 = vshrl.u32 %v54, 7
    %v56 = vsub.s32 0, %v55
    %v57 = vrot.slane %v52, %v56
    %vm59 = vcmask 130048
    %v61 = vsel %vm59, %v49, 0
    %63 = vmatprep.subr.mxu0 0.0
    %64 = vmatpush1.msra.mxu0 %v50
    %65 = vmatprep.subr.mxu0 0.0
    %66 = vmatpush1.msra.mxu0 %v51
    %67 = vmatprep.subr.mxu0 0.0
    %68 = vmatpush1.msra.mxu0 0.0
    %69 = vmatprep.subr.mxu0 0.0
    %70 = vmatpush1.msra.mxu0 0.0
    %71 = vmatprep.subr.mxu0 0.0
    %72 = vmatpush1.msra.mxu0 0.0
    %73 = vmatprep.subr.mxu0 0.0
    %74 = vmatpush1.msra.mxu0 0.0
    %75 = vmatprep.subr.mxu0 0.0
    %76 = vmatpush1.msra.mxu0 0.0
    %77 = vmatprep.subr.mxu0 0.0
    %78 = vmatpush1.msra.mxu0 0.0
    %79 = vmatprep.subr.mxu0 0.0
    %80 = vmatpush1.msra.mxu0 0.0
    %81 = vmatprep.subr.mxu0 0.0
    %82 = vmatpush1.msra.mxu0 0.0
    %83 = vmatprep.subr.mxu0 0.0
    %84 = vmatpush1.msra.mxu0 0.0
    %85 = vmatprep.subr.mxu0 0.0
    %86 = vmatpush1.msra.mxu0 0.0
    %87 = vmatprep.subr.mxu0 0.0
    %88 = vmatpush1.msra.mxu0 0.0
    %89 = vmatprep.subr.mxu0 0.0
    %90 = vmatpush1.msra.mxu0 0.0
    %91 = vmatprep.subr.mxu0 0.0
    %92 = vmatpush1.msra.mxu0 0.0
    %93 = vmatprep.subr.mxu0 0.0
    %94 = vmatpush1.msra.mxu0 0.0
    %95 = vmatprep.subr.mxu0 0.0
    %96 = vmatpush1.msra.mxu0 0.0
    %97 = vmatprep.subr.mxu0 0.0
    %98 = vmatpush1.msra.mxu0 0.0
    %99 = vmatprep.subr.mxu0 0.0
    %100 = vmatpush1.msra.mxu0 0.0
    %101 = vmatprep.subr.mxu0 0.0
    %102 = vmatpush1.msra.mxu0 0.0
    %103 = vmatprep.subr.mxu0 0.0
    %104 = vmatpush1.msra.mxu0 0.0
    %105 = vmatprep.subr.mxu0 0.0
    %106 = vmatpush1.msra.mxu0 0.0
    %107 = vmatprep.subr.mxu0 0.0
    %108 = vmatpush1.msra.mxu0 0.0
    %109 = vmatprep.subr.mxu0 0.0
    %110 = vmatpush1.msra.mxu0 0.0
    %111 = vmatprep.subr.mxu0 0.0
    %112 = vmatpush1.msra.mxu0 0.0
    %113 = vmatprep.subr.mxu0 0.0
    %114 = vmatpush1.msra.mxu0 0.0
    %115 = vmatprep.subr.mxu0 0.0
    %116 = vmatpush1.msra.mxu0 0.0
    %117 = vmatprep.subr.mxu0 0.0
    %118 = vmatpush1.msra.mxu0 0.0
    %119 = vmatprep.subr.mxu0 0.0
    %120 = vmatpush1.msra.mxu0 0.0
    %121 = vmatprep.subr.mxu0 0.0
    %122 = vmatpush1.msra.mxu0 0.0
    %123 = vmatprep.subr.mxu0 0.0
    %124 = vmatpush1.msra.mxu0 0.0
    %125 = vmatprep.subr.mxu0 0.0
    %126 = vmatpush1.msra.mxu0 0.0
    %127 = vmatprep.mubr.f32.mxu0 0.0
    %128 = vmatmul.mubr.f32.gmra.mrb[0].mxu0 %v61
    %v129 = vpop.f32.mrb[0].mxu0
    %v130 = vadd.f32 %v57, %v129
    %v131 = vpop.f32.mrb[0].mxu0
    %132 = vdwg.mxu0
    %v133 = vtanh.pop %v130
    %v134 = vld [vmem:[%s3] sm:$0x1]
    %v136 = vlaneseq
    %v137 = vshrl.u32 %v136, 7
    %v138 = vsub.s32 0, %v137
    %v139 = vrot.slane %v134, %v138
    %v141 = vmul.f32 %v133, %v139
    %vm142 = vcmask 261120
    %v143 = vsel %vm142, %v141, 0.0
    %144 = vadd.xlane.f32.xlu0 %v143
    %v145 = vpop.xlane.xlu0 %144
    %v146 = vld [vmem:[#allocation2] sm:$0x1]
    %148 = vset.pattern.permute.xlu0 0
    %149 = vperm.xlu0 %148, %v146
    %v150 = vpop.permute.xlu0 %149
    %v152 = vlaneseq
    %v153 = vshrl.u32 %v152, 7
    %v154 = vsub.s32 0, %v153
    %v155 = vrot.slane %v150, %v154
    %v156 = vadd.f32 %v145, %v155
    %v157 = vxor.u32 %v156, 2147483648
    %v158 = vmul.f32 %v157, 1.442695
    %v159 = vpow.pop %v158
    %v160 = vadd.f32 %v159, 1.0
    %v161 = vrcp.pop %v160
    %v162 = vmul.f32 1.0, %v161
    %v164 = vlaneseq
    %v165 = vand.u32 %v164, 127
    %v166 = vlaneseq
    %v167 = vshrl.u32 %v166, 7
    %v168 = vsub.s32 %v165, %v167
    %v169 = vrot.slane %v162, %v168
    %vm171 = vcmask 57344
    %172 = vst.msk [vmem:[#allocation8] sm:$0x1] %vm171, %v169
    // Predicated region
    $region30: #{tpu_custom_call.1} parent=1 // pred_check
      _
    $region31: #{tpu_custom_call.1} parent=1 // pred_check_branch
      %174 = sbr.rel (0) target = $region33
    $region32: #{tpu_custom_call.1} parent=1 // pred_region
      %s176 = ssub.s32 16, 16
      %177 = vsyncadd [#allocation5], %s176
      %s179 = sshll.u32 [#allocation8], 4
      %s180 = int_to_ptr.vmem [resolvable:$true] %s179
      %182 = dma.vmem_to_hbm [thread:$0]  %s180, 16, %s5, [#allocation5]
    $region33: #{tpu_custom_call.1} parent=1 // pred_fallthru
      _
    // Predicated region
    $region34: #{tpu_custom_call.1} parent=1 // pred_check
      _
    $region35: #{tpu_custom_call.1} parent=1 // pred_check_branch
      %184 = sbr.rel (0) target = $region37
    $region36: #{tpu_custom_call.1} parent=1 // pred_region
      %185 = dma.done [#allocation5], 16
    $region37: #{tpu_custom_call.1} parent=1 // pred_fallthru
      _
    %186 = vsyncpa [#allocation4], 1
    %187 = vsyncpa [#allocation7], 1
    %188 = vsyncpa [#allocation5], 1

</llo_original>
